<compile_context>
chip_gen: v7x
topology: tpu7x:2x2x1
jax: 0.10.0
libtpu: 0.0.40
codegen_flags: <defaults>
</compile_context>

<pallas_src>
import jax
import jax.numpy as jnp
from jax.experimental import pallas as pl
from jax.experimental.pallas import tpu as pltpu


def _encoder_kernel(y_ref, w_ref, b_ref, o_ref):
    """One (tm, tn) output tile: o = y @ w + b, f32 accumulation on the MXU."""
    acc = jnp.dot(y_ref[...], w_ref[...], preferred_element_type=jnp.float32)
    o_ref[...] = (acc + b_ref[...]).astype(o_ref.dtype)


def _round_up(x, m):
    return ((x + m - 1) // m) * m


def _sublane_gran(dtype):
    # Sublane packing granularity: 8 (32-bit), 16 (16-bit), 32 (8-bit).
    return max(8, 32 // jnp.dtype(dtype).itemsize)


def base_encoder_forward(Y, W, b, *, compute_dtype=None, out_dtype=None,
                         block_batch=512):
    """Affine encoder: [batch, n_vars] -> [batch, embedding_dim]."""
    batch, n_vars = Y.shape
    n_vars_w, embedding_dim = W.shape
    assert n_vars == n_vars_w
    assert b.shape == (embedding_dim,)

    if compute_dtype is None:
        compute_dtype = Y.dtype
    if out_dtype is None:
        out_dtype = Y.dtype
    cs = jnp.dtype(compute_dtype).itemsize
    osz = jnp.dtype(out_dtype).itemsize
    gran = max(_sublane_gran(compute_dtype), _sublane_gran(out_dtype))

    # ---- VMEM capacity (per generation) -----------------------------------
    try:
        vmem_physical = int(pltpu.get_tpu_info().vmem_capacity_bytes)
    except Exception:
        vmem_physical = 64 << 20  # conservative: v7x per-TC VMEM
    vmem_tile_budget = int(vmem_physical * 0.6)   # what the tiles may occupy
    vmem_limit_bytes = int(vmem_physical * 0.85)  # raise the scoped limit

    # ---- embedding-dim tiling (lane-dense: multiples of 128) --------------
    ed_pad = _round_up(embedding_dim, 128)
    if ed_pad <= 2048:
        tn, ne = ed_pad, 1
    else:
        tn = 128
        for cand in range(1024, 0, -128):
            if ed_pad % cand == 0:
                tn = cand
                break
        ne = ed_pad // tn

    # ---- batch tiling ------------------------------------------------------
    # Per-batch-row VMEM cost (double-buffered Y and out, f32 acc temp) plus
    # fixed cost for double-buffered W and b tiles.
    nv_lane = _round_up(n_vars, 128)
    nv_sub = _round_up(n_vars, _sublane_gran(compute_dtype))
    fixed_bytes = 2 * nv_sub * tn * cs + 2 * 8 * tn * 4
    per_row_bytes = 2 * nv_lane * cs + 2 * tn * osz + tn * 4
    tm_vmem = max(gran, (vmem_tile_budget - fixed_bytes) // per_row_bytes)

    tm_cap = min(block_batch, tm_vmem)
    tm_cap = max(gran, (tm_cap // gran) * gran)

    nb = pl.cdiv(batch, tm_cap)
    if ne == 1 and nb < 2 and batch > gran:
        nb = 2  # make sure both TensorCores get work on v7x
    tm = _round_up(pl.cdiv(batch, nb), gran)
    batch_pad = tm * nb

    # ---- pad only what is actually needed (fast path: nothing) ------------
    need_m_pad = batch_pad != batch
    need_n_pad = ed_pad != embedding_dim

    Yc = Y.astype(compute_dtype)
    Wc = W.astype(compute_dtype)
    bc = b.astype(jnp.float32).reshape(1, embedding_dim)
    if need_m_pad:
        Yc = jnp.pad(Yc, ((0, batch_pad - batch), (0, 0)))
    if need_n_pad:
        Wc = jnp.pad(Wc, ((0, 0), (0, ed_pad - embedding_dim)))
        bc = jnp.pad(bc, ((0, 0), (0, ed_pad - embedding_dim)))

    flops = 2 * batch_pad * n_vars * ed_pad
    bytes_accessed = (Yc.size * cs + Wc.size * cs + bc.size * 4
                      + batch_pad * ed_pad * osz)

    out = pl.pallas_call(
        _encoder_kernel,
        out_shape=jax.ShapeDtypeStruct((batch_pad, ed_pad), out_dtype),
        grid_spec=pltpu.PrefetchScalarGridSpec(
            num_scalar_prefetch=0,
            grid=(nb, ne),  # batch outer, embedding inner
            in_specs=[
                pl.BlockSpec((tm, n_vars), lambda i, j: (i, 0)),   # Y tile
                pl.BlockSpec((n_vars, tn), lambda i, j: (0, j)),   # W tile
                pl.BlockSpec((1, tn), lambda i, j: (0, j)),        # bias tile
            ],
            out_specs=pl.BlockSpec((tm, tn), lambda i, j: (i, j)),
        ),
        compiler_params=pltpu.CompilerParams(
            dimension_semantics=("parallel", "parallel"),
            vmem_limit_bytes=vmem_limit_bytes,
        ),
        cost_estimate=pl.CostEstimate(
            flops=flops, transcendentals=0, bytes_accessed=bytes_accessed),
    )(Yc, Wc, bc)

    if need_m_pad or need_n_pad:
        out = out[:batch, :embedding_dim]
    return out


if __name__ == "__main__":
    key = jax.random.PRNGKey(0)

    # --- Case 1: tiny shapes, unaligned embedding_dim (padding path) -------
    batch, n_vars, embedding_dim = 8, 4, 32
    k_y, k_w, k_b, key = jax.random.split(key, 4)
    Y = jax.random.normal(k_y, (batch, n_vars), dtype=jnp.float32)
    W = jax.random.normal(k_w, (n_vars, embedding_dim), dtype=jnp.float32) * 0.1
    b = jax.random.normal(k_b, (embedding_dim,), dtype=jnp.float32) * 0.01

    out = base_encoder_forward(Y, W, b)
    jax.block_until_ready(out)
    ref = Y @ W + b[None, :]
    assert out.shape == (batch, embedding_dim)
    assert jnp.allclose(out, ref, atol=1e-5, rtol=1e-5)

    # --- Case 2: bf16 compute, f32 output -----------------------------------
    batch2, n_vars2, embedding_dim2 = 16, 32, 64
    k_y, k_w, k_b, key = jax.random.split(key, 4)
    Y2 = jax.random.normal(k_y, (batch2, n_vars2), dtype=jnp.float32)
    W2 = jax.random.normal(k_w, (n_vars2, embedding_dim2), dtype=jnp.float32) * 0.1
    b2 = jax.random.normal(k_b, (embedding_dim2,), dtype=jnp.float32) * 0.01

    out2 = base_encoder_forward(Y2, W2, b2, compute_dtype=jnp.bfloat16)
    jax.block_until_ready(out2)
    ref2 = (Y2.astype(jnp.bfloat16).astype(jnp.float32)
            @ W2.astype(jnp.bfloat16).astype(jnp.float32)) + b2[None, :]
    assert out2.shape == (batch2, embedding_dim2)
    assert jnp.allclose(out2, ref2, atol=2e-2, rtol=2e-2)

    # --- Case 3: fully aligned fast path (no pad/slice), 2 batch tiles,
    #             bf16 output ------------------------------------------------
    batch3, n_vars3, embedding_dim3 = 64, 8, 128
    k_y, k_w, k_b, key = jax.random.split(key, 4)
    Y3 = jax.random.normal(k_y, (batch3, n_vars3), dtype=jnp.float32)
    W3 = jax.random.normal(k_w, (n_vars3, embedding_dim3), dtype=jnp.float32) * 0.1
    b3 = jax.random.normal(k_b, (embedding_dim3,), dtype=jnp.float32) * 0.01

    out3 = base_encoder_forward(Y3, W3, b3, out_dtype=jnp.bfloat16)
    jax.block_until_ready(out3)
    ref3 = (Y3 @ W3 + b3[None, :]).astype(jnp.bfloat16)
    assert out3.shape == (batch3, embedding_dim3)
    assert out3.dtype == jnp.bfloat16
    assert jnp.allclose(out3.astype(jnp.float32), ref3.astype(jnp.float32),
                        atol=2e-2, rtol=2e-2)

    print("KERNEL_OK")
</pallas_src>

<mosaic_0001>
module attributes {stable_mosaic.version = 11 : i64} {
  func.func @_encoder_kernel(%arg0: i32, %arg1: i32, %arg2: memref<8x4xf32, #tpu.memory_space<vmem>>, %arg3: memref<4x128xf32, #tpu.memory_space<vmem>>, %arg4: memref<1x128xf32, #tpu.memory_space<vmem>>, %arg5: memref<8x128xf32, #tpu.memory_space<vmem>>) attributes {dimension_semantics = [#tpu.dimension_semantics<parallel>, #tpu.dimension_semantics<parallel>], iteration_bounds = array<i64: 1, 1>, scalar_prefetch = 0 : i64, scratch_operands = 0 : i64, tpu.core_type = #tpu.core_type<tc>, window_params = [{transform_indices = @transform_0, window_bounds = array<i64: 8, 4>}, {transform_indices = @transform_1, window_bounds = array<i64: 4, 128>}, {transform_indices = @transform_2, window_bounds = array<i64: 1, 128>}, {transform_indices = @transform_3, window_bounds = array<i64: 8, 128>}]} {
    %c0 = arith.constant 0 : index
    %c0_0 = arith.constant 0 : index
    %0 = vector.load %arg2[%c0, %c0_0] : memref<8x4xf32, #tpu.memory_space<vmem>>, vector<8x4xf32>
    %c0_1 = arith.constant 0 : index
    %c0_2 = arith.constant 0 : index
    %1 = vector.load %arg3[%c0_1, %c0_2] : memref<4x128xf32, #tpu.memory_space<vmem>>, vector<4x128xf32>
    %cst = arith.constant dense<0.000000e+00> : vector<8x128xf32>
    %2 = tpu.matmul %0, %1, %cst {dimension_numbers = #tpu.dot_dimension_numbers<[1], [0], [0], [1], [0, 0, 1, 1], [], []>} : vector<8x4xf32>, vector<4x128xf32>, vector<8x128xf32> -> vector<8x128xf32>
    %c0_3 = arith.constant 0 : index
    %c0_4 = arith.constant 0 : index
    %3 = vector.load %arg4[%c0_3, %c0_4] : memref<1x128xf32, #tpu.memory_space<vmem>>, vector<1x128xf32>
    %4 = vector.broadcast %3 : vector<1x128xf32> to vector<8x128xf32>
    %5 = arith.addf %2, %4 : vector<8x128xf32>
    %c0_5 = arith.constant 0 : index
    %c0_6 = arith.constant 0 : index
    %6 = vector.load %arg5[%c0_5, %c0_6] : memref<8x128xf32, #tpu.memory_space<vmem>>, vector<8x128xf32>
    tpu.vector_store %arg5[%c0_5, %c0_6], %5 {strides = array<i32>} : memref<8x128xf32, #tpu.memory_space<vmem>>, vector<8x128xf32>,
    return
  }
  func.func @transform_0(%arg0: i32, %arg1: i32) -> (i32, i32) {
    %c0_i32 = arith.constant 0 : i32
    %c0_i32_0 = arith.constant 0 : i32
    return %arg0, %c0_i32 : i32, i32
  }
  func.func @transform_1(%arg0: i32, %arg1: i32) -> (i32, i32) {
    %c0_i32 = arith.constant 0 : i32
    %c0_i32_0 = arith.constant 0 : i32
    return %c0_i32, %arg1 : i32, i32
  }
  func.func @transform_2(%arg0: i32, %arg1: i32) -> (i32, i32) {
    %c0_i32 = arith.constant 0 : i32
    %c0_i32_0 = arith.constant 0 : i32
    return %c0_i32, %arg1 : i32, i32
  }
  func.func @transform_3(%arg0: i32, %arg1: i32) -> (i32, i32) {
    %c0_i32 = arith.constant 0 : i32
    return %arg0, %arg1 : i32, i32
  }
}

</mosaic_0001>

<llo_original>
// kernel: tpu_custom_call.1
$region0: #{tpu_custom_call.1}
  #allocation0 [shape = 'u32[]', space=smem, size = 0x4, offset = 0x4, fixed_abs, tag = 'smem constant byte address 0x4 - core index']
  #allocation1 [shape = 'u32[144,128]{1,0:T(1,128)}', space=vmem, size = 0x12000, scoped, tag = 'internal scratch']
  %s0 = inlined_call_operand.vmem [shape: f32[8,4], index: 0, kind: input, shape index: {}]
  %s1 = inlined_call_operand.vmem [shape: f32[4,128], index: 1, kind: input, shape index: {}]
  %s2 = inlined_call_operand.vmem [shape: f32[1,128], index: 2, kind: input, shape index: {}]
  %s3 = inlined_call_operand.hbm [shape: f32[8,128], index: 3, kind: output, shape index: {}]
  %s4 = sld [smem:[#allocation0]]
  $region22: #{tpu_custom_call.1} parent=0
    _
  %s6 = ssub.s32 1, %s4
  %s7 = scalar_select 0, %s6, %s4
  $region1: #{tpu_custom_call.1} parent=0
    #allocation2 [shape = 'u8[4096]{0}', space=vmem, size = 0x1000, scoped, tag = 'output window, operand 0, single buffered']
    #allocation3 [shape = 's32[1]{0}', space=sflag, size = 0x4, scoped, tag = 'scoped memory for tpu_custom_call.1']
    %8 = vsyncpa [#allocation3], 0
    // Predicated region
    $region2: #{tpu_custom_call.1} parent=1 // pred_check
      _
    $region3: #{tpu_custom_call.1} parent=1 // pred_check_branch
      %10 = sbr.rel (0) target = $region5
    $region4: #{tpu_custom_call.1} parent=1 // pred_region
      _
    $region5: #{tpu_custom_call.1} parent=1 // pred_fallthru
      _
    // Predicated region
    $region6: #{tpu_custom_call.1} parent=1 // pred_check
      _
    $region7: #{tpu_custom_call.1} parent=1 // pred_check_branch
      %12 = sbr.rel (0) target = $region9
    $region8: #{tpu_custom_call.1} parent=1 // pred_region
      _
    $region9: #{tpu_custom_call.1} parent=1 // pred_fallthru
      _
    // Predicated region
    $region10: #{tpu_custom_call.1} parent=1 // pred_check
      _
    $region11: #{tpu_custom_call.1} parent=1 // pred_check_branch
      %14 = sbr.rel (0) target = $region13
    $region12: #{tpu_custom_call.1} parent=1 // pred_region
      _
    $region13: #{tpu_custom_call.1} parent=1 // pred_fallthru
      _
    %v15 = vld [vmem:[%s0] sm:$0xff]
    %v16 = vld [vmem:[%s1] sm:$0xf]
    %v17 = vld [vmem:[%s2] sm:$0x1]
    %v19 = vlaneseq
    %v20 = vshrl.u32 %v19, 7
    %v21 = vsub.s32 0, %v20
    %v22 = vrot.slane %v17, %v21
    %vm24 = vcmask 31744
    %v26 = vsel %vm24, %v15, 0
    %vm28 = vcmask 1043456
    %v30 = vsel %vm28, %v16, 0
    %32 = vmatprep.subr.mxu0 0.0
    %33 = vmatpush1.msra.mxu0 %v30
    %34 = vmatprep.subr.mxu0 0.0
    %35 = vmatpush1.msra.mxu0 0.0
    %36 = vmatprep.subr.mxu0 0.0
    %37 = vmatpush1.msra.mxu0 0.0
    %38 = vmatprep.subr.mxu0 0.0
    %39 = vmatpush1.msra.mxu0 0.0
    %40 = vmatprep.subr.mxu0 0.0
    %41 = vmatpush1.msra.mxu0 0.0
    %42 = vmatprep.subr.mxu0 0.0
    %43 = vmatpush1.msra.mxu0 0.0
    %44 = vmatprep.subr.mxu0 0.0
    %45 = vmatpush1.msra.mxu0 0.0
    %46 = vmatprep.subr.mxu0 0.0
    %47 = vmatpush1.msra.mxu0 0.0
    %48 = vmatprep.subr.mxu0 0.0
    %49 = vmatpush1.msra.mxu0 0.0
    %50 = vmatprep.subr.mxu0 0.0
    %51 = vmatpush1.msra.mxu0 0.0
    %52 = vmatprep.subr.mxu0 0.0
    %53 = vmatpush1.msra.mxu0 0.0
    %54 = vmatprep.subr.mxu0 0.0
    %55 = vmatpush1.msra.mxu0 0.0
    %56 = vmatprep.subr.mxu0 0.0
    %57 = vmatpush1.msra.mxu0 0.0
    %58 = vmatprep.subr.mxu0 0.0
    %59 = vmatpush1.msra.mxu0 0.0
    %60 = vmatprep.subr.mxu0 0.0
    %61 = vmatpush1.msra.mxu0 0.0
    %62 = vmatprep.subr.mxu0 0.0
    %63 = vmatpush1.msra.mxu0 0.0
    %64 = vmatprep.subr.mxu0 0.0
    %65 = vmatpush1.msra.mxu0 0.0
    %66 = vmatprep.subr.mxu0 0.0
    %67 = vmatpush1.msra.mxu0 0.0
    %68 = vmatprep.subr.mxu0 0.0
    %69 = vmatpush1.msra.mxu0 0.0
    %70 = vmatprep.subr.mxu0 0.0
    %71 = vmatpush1.msra.mxu0 0.0
    %72 = vmatprep.subr.mxu0 0.0
    %73 = vmatpush1.msra.mxu0 0.0
    %74 = vmatprep.subr.mxu0 0.0
    %75 = vmatpush1.msra.mxu0 0.0
    %76 = vmatprep.subr.mxu0 0.0
    %77 = vmatpush1.msra.mxu0 0.0
    %78 = vmatprep.subr.mxu0 0.0
    %79 = vmatpush1.msra.mxu0 0.0
    %80 = vmatprep.subr.mxu0 0.0
    %81 = vmatpush1.msra.mxu0 0.0
    %82 = vmatprep.subr.mxu0 0.0
    %83 = vmatpush1.msra.mxu0 0.0
    %84 = vmatprep.subr.mxu0 0.0
    %85 = vmatpush1.msra.mxu0 0.0
    %86 = vmatprep.subr.mxu0 0.0
    %87 = vmatpush1.msra.mxu0 0.0
    %88 = vmatprep.subr.mxu0 0.0
    %89 = vmatpush1.msra.mxu0 0.0
    %90 = vmatprep.subr.mxu0 0.0
    %91 = vmatpush1.msra.mxu0 0.0
    %92 = vmatprep.subr.mxu0 0.0
    %93 = vmatpush1.msra.mxu0 0.0
    %94 = vmatprep.subr.mxu0 0.0
    %95 = vmatpush1.msra.mxu0 0.0
    %96 = vmatprep.mubr.f32.mxu0 0.0
    %97 = vmatmul.mubr.f32.gmra.mrb[0].mxu0 %v26
    %v98 = vpop.f32.mrb[0].mxu0
    %v99 = vadd.f32 %v22, %v98
    %v100 = vpop.f32.mrb[0].mxu0
    %101 = vdwg.mxu0
    %102 = vst [vmem:[#allocation2] sm:$0xff] %v99
    // Predicated region
    $region14: #{tpu_custom_call.1} parent=1 // pred_check
      _
    $region15: #{tpu_custom_call.1} parent=1 // pred_check_branch
      %104 = sbr.rel (0) target = $region17
    $region16: #{tpu_custom_call.1} parent=1 // pred_region
      %s106 = ssub.s32 128, 128
      %107 = vsyncadd [#allocation3], %s106
      %s109 = sshll.u32 [#allocation2], 4
      %s110 = int_to_ptr.vmem [resolvable:$true] %s109
      %112 = dma.vmem_to_hbm [thread:$0]  %s110, 128, %s3, [#allocation3]
    $region17: #{tpu_custom_call.1} parent=1 // pred_fallthru
      _
    // Predicated region
    $region18: #{tpu_custom_call.1} parent=1 // pred_check
      _
    $region19: #{tpu_custom_call.1} parent=1 // pred_check_branch
      %114 = sbr.rel (0) target = $region21
    $region20: #{tpu_custom_call.1} parent=1 // pred_region
      %115 = dma.done [#allocation3], 128
    $region21: #{tpu_custom_call.1} parent=1 // pred_fallthru
      _
    %116 = vsyncpa [#allocation3], 1

</llo_original>
